<compile_context>
chip_gen: v7x
topology: tpu7x:2x2x1
jax: 0.10.0
libtpu: 0.0.40
codegen_flags: <defaults>
</compile_context>

<pallas_src>
import functools

import jax
import jax.numpy as jnp
from jax.experimental import pallas as pl
from jax.experimental.pallas import tpu as pltpu


def _focal_kernel(x_ref, t_ref, o_ref, *, alpha, gamma, eps_soft, eps_onehot):
    # x_ref: (C, TP) logits tile, t_ref: (1, TP) int32 labels, o_ref: (1, TP).
    x = x_ref[...].astype(jnp.float32)           # (C, TP)
    t = t_ref[...]                               # (1, TP) int32

    # Numerically stable softmax over the class (sublane) axis.
    m = jnp.max(x, axis=0, keepdims=True)        # (1, TP)   XLU reduce
    e = jnp.exp(x - m)                           # (C, TP)   EUP
    inv_sum = pl.reciprocal(jnp.sum(e, axis=0, keepdims=True), approx=False)
    soft = e * inv_sum + eps_soft                # F.softmax(x, 1) + eps

    # weight = (1 - p)^gamma.  gamma == 2 (the clrnet default) -> VPU square
    # (avoids a log+exp pair per element and NaN for base ~ -eps).
    if float(gamma) == 2.0:
        base = 1.0 - soft
        weight = base * base
    else:
        weight = jnp.power(jnp.maximum(1.0 - soft, 0.0), gamma)

    focal = (-alpha) * weight * jnp.log(soft)    # -alpha * (1-p)^g * log(p)

    # one_hot(target) + eps_onehot (kornia one_hot adds eps to every entry).
    class_ids = jax.lax.broadcasted_iota(jnp.int32, x.shape, 0)   # (C, TP)
    onehot = jnp.where(class_ids == t, 1.0, 0.0) + eps_onehot

    loss = jnp.sum(onehot * focal, axis=0, keepdims=True)         # (1, TP)
    o_ref[...] = loss.astype(o_ref.dtype)


def _choose_lane_tile(hw, num_classes, budget_bytes=8 << 20):
    """Pick a lane tile width: multiple of 128, within a small VMEM budget,
    preferring an exact divisor of hw so no padding pass is needed."""
    # double-buffered bytes per lane column: C f32 logits + int32 target + f32 out
    per_lane = 2 * (num_classes + 2) * 4
    cap = (budget_bytes // per_lane) // 128 * 128
    cap = max(128, min(32768, cap))
    if hw <= cap:
        return -(-hw // 128) * 128               # one (possibly padded) tile per row
    if hw % 128 == 0:
        best = 128
        for d in range(128, cap + 1, 128):       # largest 128-multiple dividing hw
            if hw % d == 0:
                best = d
        return best
    return cap                                   # fallback: pad to multiple of cap


def focal_loss_pallas(logits, target, alpha, gamma=2.0, reduction="none",
                      eps=1e-6, tile_p=None):
    """logits: (N, C, H, W) float, target: (N, H, W) integer in [0, C-1]."""
    N, C, H, W = logits.shape
    HW = H * W

    # Free, contiguous reshapes (no transpose, no extra HBM pass).
    x3 = logits.reshape(N, C, HW)
    t3 = target.astype(jnp.int32).reshape(N, 1, HW)

    if tile_p is None:
        tile_p = _choose_lane_tile(HW, C)

    HW_pad = -(-HW // tile_p) * tile_p
    if HW_pad != HW:
        # Rare fallback (HW not a multiple of 128 / awkward sizes).
        x3 = jnp.pad(x3, ((0, 0), (0, 0), (0, HW_pad - HW)))
        t3 = jnp.pad(t3, ((0, 0), (0, 0), (0, HW_pad - HW)))

    kernel = functools.partial(
        _focal_kernel,
        alpha=float(alpha),
        gamma=float(gamma),
        eps_soft=float(eps),      # eps added to softmax (module's self.eps)
        eps_onehot=1e-6,          # kornia one_hot default eps
    )

    grid = (N, HW_pad // tile_p)
    out = pl.pallas_call(
        kernel,
        out_shape=jax.ShapeDtypeStruct((N, 1, HW_pad), jnp.float32),
        grid_spec=pltpu.PrefetchScalarGridSpec(
            num_scalar_prefetch=0,
            grid=grid,
            in_specs=[
                pl.BlockSpec((None, C, tile_p), lambda n, i: (n, 0, i)),
                pl.BlockSpec((None, 1, tile_p), lambda n, i: (n, 0, i)),
            ],
            out_specs=pl.BlockSpec((None, 1, tile_p), lambda n, i: (n, 0, i)),
        ),
        compiler_params=pltpu.CompilerParams(
            dimension_semantics=("parallel", "parallel")),
    )(x3, t3)

    loss_tmp = out[:, 0, :HW].reshape(N, H, W)   # matches torch reduction='none'

    if reduction == "none":
        return loss_tmp
    elif reduction == "mean":
        return jnp.mean(loss_tmp)
    elif reduction == "sum":
        return jnp.sum(loss_tmp)
    else:
        raise NotImplementedError(f"Invalid reduction mode: {reduction}")


def _focal_loss_ref(logits, target, alpha, gamma=2.0, reduction="none", eps=1e-6):
    # Pure-JAX reference mirroring the PyTorch code, for verification.
    C = logits.shape[1]
    soft = jax.nn.softmax(logits.astype(jnp.float32), axis=1) + eps
    onehot = jax.nn.one_hot(target, C, axis=1, dtype=jnp.float32) + 1e-6
    weight = jnp.power(1.0 - soft, gamma)
    focal = -alpha * weight * jnp.log(soft)
    loss_tmp = jnp.sum(onehot * focal, axis=1)
    if reduction == "none":
        return loss_tmp
    elif reduction == "mean":
        return jnp.mean(loss_tmp)
    else:
        return jnp.sum(loss_tmp)


class FocalLoss:
    """JAX/Pallas port of clrnet FocalLoss (forward only)."""

    def __init__(self, alpha, gamma=2.0, reduction="none"):
        self.alpha = alpha
        self.gamma = gamma
        self.reduction = reduction
        self.eps = 1e-6

    def __call__(self, logits, target):
        return focal_loss_pallas(logits, target, self.alpha, self.gamma,
                                 self.reduction, self.eps)


if __name__ == "__main__":
    key = jax.random.PRNGKey(0)

    # Case 1: H*W multiple of 128 (no padding path), reduction='none' / 'mean'.
    N, C, H, W = 2, 4, 16, 16
    k1, k2 = jax.random.split(key)
    logits = jax.random.normal(k1, (N, C, H, W), dtype=jnp.float32)
    target = jax.random.randint(k2, (N, H, W), 0, C, dtype=jnp.int32)

    loss_none = FocalLoss(alpha=0.25, gamma=2.0, reduction="none")(logits, target)
    jax.block_until_ready(loss_none)
    ref_none = _focal_loss_ref(logits, target, 0.25, 2.0, "none")
    assert loss_none.shape == (N, H, W)
    assert jnp.allclose(loss_none, ref_none, atol=1e-5, rtol=1e-5)

    loss_mean = FocalLoss(alpha=0.25, gamma=2.0, reduction="mean")(logits, target)
    jax.block_until_ready(loss_mean)
    ref_mean = _focal_loss_ref(logits, target, 0.25, 2.0, "mean")
    assert jnp.allclose(loss_mean, ref_mean, atol=1e-5, rtol=1e-5)

    # Case 2: odd spatial size exercising the in-wrapper tail padding fallback.
    H2, W2 = 10, 10
    k3, k4 = jax.random.split(k1)
    logits2 = jax.random.normal(k3, (N, C, H2, W2), dtype=jnp.float32)
    target2 = jax.random.randint(k4, (N, H2, W2), 0, C, dtype=jnp.int32)
    loss2 = FocalLoss(alpha=0.5, gamma=2.0, reduction="sum")(logits2, target2)
    jax.block_until_ready(loss2)
    ref2 = _focal_loss_ref(logits2, target2, 0.5, 2.0, "sum")
    assert jnp.allclose(loss2, ref2, atol=1e-4, rtol=1e-5)

    print("KERNEL_OK")
</pallas_src>

<mosaic_0001>
module attributes {stable_mosaic.version = 11 : i64} {
  func.func @_focal_kernel(%arg0: i32, %arg1: i32, %arg2: memref<1x4x256xf32, #tpu.memory_space<vmem>>, %arg3: memref<1x1x256xi32, #tpu.memory_space<vmem>>, %arg4: memref<1x1x256xf32, #tpu.memory_space<vmem>>) attributes {dimension_semantics = [#tpu.dimension_semantics<parallel>, #tpu.dimension_semantics<parallel>], iteration_bounds = array<i64: 2, 1>, scalar_prefetch = 0 : i64, scratch_operands = 0 : i64, tpu.core_type = #tpu.core_type<tc>, window_params = [{transform_indices = @transform_0, window_bounds = array<i64: 1, 4, 256>}, {transform_indices = @transform_1, window_bounds = array<i64: 1, 1, 256>}, {transform_indices = @transform_2, window_bounds = array<i64: 1, 1, 256>}]} {
    %c0 = arith.constant 0 : index
    %c0_0 = arith.constant 0 : index
    %c0_1 = arith.constant 0 : index
    %0 = vector.load %arg2[%c0, %c0_0, %c0_1] : memref<1x4x256xf32, #tpu.memory_space<vmem>>, vector<1x4x256xf32>
    %1 = vector.shape_cast %0 : vector<1x4x256xf32> to vector<4x256xf32>
    %c0_2 = arith.constant 0 : index
    %c0_3 = arith.constant 0 : index
    %c0_4 = arith.constant 0 : index
    %2 = vector.load %arg3[%c0_2, %c0_3, %c0_4] : memref<1x1x256xi32, #tpu.memory_space<vmem>>, vector<1x1x256xi32>
    %3 = vector.shape_cast %2 : vector<1x1x256xi32> to vector<1x256xi32>
    %cst = arith.constant dense<0xFF800000> : vector<256xf32>
    %4 = vector.multi_reduction <maximumf>, %1, %cst [0] : vector<4x256xf32> to vector<256xf32>
    %5 = vector.shape_cast %4 : vector<256xf32> to vector<1x256xf32>
    %6 = vector.broadcast %5 : vector<1x256xf32> to vector<4x256xf32>
    %7 = arith.subf %1, %6 : vector<4x256xf32>
    %8 = math.exp %7 : vector<4x256xf32>
    %cst_5 = arith.constant dense<0.000000e+00> : vector<256xf32>
    %9 = vector.multi_reduction <add>, %8, %cst_5 [0] : vector<4x256xf32> to vector<256xf32>
    %10 = vector.shape_cast %9 : vector<256xf32> to vector<1x256xf32>
    %11 = tpu.reciprocal %10 : vector<1x256xf32> -> vector<1x256xf32>
    %12 = vector.broadcast %11 : vector<1x256xf32> to vector<4x256xf32>
    %13 = arith.mulf %8, %12 : vector<4x256xf32>
    %cst_6 = arith.constant 9.99999997E-7 : f32
    %14 = vector.broadcast %cst_6 : f32 to vector<4x256xf32>
    %15 = arith.addf %13, %14 : vector<4x256xf32>
    %cst_7 = arith.constant 1.000000e+00 : f32
    %16 = vector.broadcast %cst_7 : f32 to vector<4x256xf32>
    %17 = arith.subf %16, %15 : vector<4x256xf32>
    %18 = arith.mulf %17, %17 : vector<4x256xf32>
    %cst_8 = arith.constant -2.500000e-01 : f32
    %19 = vector.broadcast %cst_8 : f32 to vector<4x256xf32>
    %20 = arith.mulf %19, %18 : vector<4x256xf32>
    %21 = math.log %15 : vector<4x256xf32>
    %22 = arith.mulf %20, %21 : vector<4x256xf32>
    %23 = tpu.iota {dimensions = array<i32: 0>} : vector<4x256xi32>
    %24 = vector.broadcast %3 : vector<1x256xi32> to vector<4x256xi32>
    %25 = arith.cmpi eq, %23, %24 : vector<4x256xi32>
    %cst_9 = arith.constant 1.000000e+00 : f32
    %cst_10 = arith.constant 0.000000e+00 : f32
    %26 = vector.broadcast %cst_9 : f32 to vector<4x256xf32>
    %27 = vector.broadcast %cst_10 : f32 to vector<4x256xf32>
    %28 = arith.select %25, %26, %27 : vector<4x256xi1>, vector<4x256xf32>
    %cst_11 = arith.constant 9.99999997E-7 : f32
    %29 = vector.broadcast %cst_11 : f32 to vector<4x256xf32>
    %30 = arith.addf %28, %29 : vector<4x256xf32>
    %31 = arith.mulf %30, %22 : vector<4x256xf32>
    %cst_12 = arith.constant dense<0.000000e+00> : vector<256xf32>
    %32 = vector.multi_reduction <add>, %31, %cst_12 [0] : vector<4x256xf32> to vector<256xf32>
    %33 = vector.shape_cast %32 : vector<256xf32> to vector<1x256xf32>
    %c0_13 = arith.constant 0 : index
    %c0_14 = arith.constant 0 : index
    %c0_15 = arith.constant 0 : index
    %34 = vector.load %arg4[%c0_13, %c0_14, %c0_15] : memref<1x1x256xf32, #tpu.memory_space<vmem>>, vector<1x1x256xf32>
    %35 = vector.shape_cast %34 : vector<1x1x256xf32> to vector<1x256xf32>
    %36 = vector.shape_cast %33 : vector<1x256xf32> to vector<1x1x256xf32>
    tpu.vector_store %arg4[%c0_13, %c0_14, %c0_15], %36 {strides = array<i32>} : memref<1x1x256xf32, #tpu.memory_space<vmem>>, vector<1x1x256xf32>,
    return
  }
  func.func @transform_0(%arg0: i32, %arg1: i32) -> (i32, i32, i32) {
    %c0_i32 = arith.constant 0 : i32
    %c0_i32_0 = arith.constant 0 : i32
    return %arg0, %c0_i32, %arg1 : i32, i32, i32
  }
  func.func @transform_1(%arg0: i32, %arg1: i32) -> (i32, i32, i32) {
    %c0_i32 = arith.constant 0 : i32
    %c0_i32_0 = arith.constant 0 : i32
    return %arg0, %c0_i32, %arg1 : i32, i32, i32
  }
  func.func @transform_2(%arg0: i32, %arg1: i32) -> (i32, i32, i32) {
    %c0_i32 = arith.constant 0 : i32
    %c0_i32_0 = arith.constant 0 : i32
    return %arg0, %c0_i32, %arg1 : i32, i32, i32
  }
}

</mosaic_0001>

<llo_original>
// kernel: tpu_custom_call.1
$region0: #{tpu_custom_call.1}
  #allocation0 [shape = 'u32[]', space=smem, size = 0x4, offset = 0x4, fixed_abs, tag = 'smem constant byte address 0x4 - core index']
  #allocation1 [shape = 'u32[144,128]{1,0:T(1,128)}', space=vmem, size = 0x12000, scoped, tag = 'internal scratch']
  %s0 = inlined_call_operand.hbm [shape: f32[2,4,256], index: 0, kind: input, shape index: {}]
  %s1 = inlined_call_operand.hbm [shape: s32[2,1,256], index: 1, kind: input, shape index: {}]
  %s2 = inlined_call_operand.hbm [shape: f32[2,1,256], index: 2, kind: output, shape index: {}]
  %s3 = sld [smem:[#allocation0]]
  $region49: #{tpu_custom_call.1} parent=0
    _
  %s5 = ssub.s32 1, %s3
  %s6 = scalar_select 0, %s5, %s3
  $region1: #{tpu_custom_call.1} parent=0
    #allocation2 [shape = 'u8[8192]{0}', space=vmem, size = 0x2000, scoped, tag = 'input window, operand 0']
    #allocation3 [shape = 's32[2]{0}', space=sflag, size = 0x8, scoped, tag = 'scoped memory for tpu_custom_call.1']
    #allocation4 [shape = 's32[2]{0}', space=sflag, size = 0x8, scoped, tag = 'scoped memory for tpu_custom_call.1']
    #allocation5 [shape = 'u8[2048]{0}', space=vmem, size = 0x800, scoped, tag = 'input window, operand 1']
    #allocation6 [shape = 's32[2]{0}', space=sflag, size = 0x8, scoped, tag = 'scoped memory for tpu_custom_call.1']
    #allocation7 [shape = 'u8[2048]{0}', space=vmem, size = 0x800, scoped, tag = 'output window, operand 0']
    %7 = vsyncpa [#allocation3], 0
    %s8 = scalar_lea.sflag [#allocation3], 1
    %9 = vsyncpa %s8, 0
    %10 = vsyncpa [#allocation6], 0
    %s11 = scalar_lea.sflag [#allocation6], 1
    %12 = vsyncpa %s11, 0
    %13 = vsyncpa [#allocation4], 0
    %s14 = scalar_lea.sflag [#allocation4], 1
    %15 = vsyncpa %s14, 0
    loop: start=0, step=1, limit=4
    $region2: #{tpu_custom_call.1} parent=1 // loop_pre_header
      _
    $region3: #{tpu_custom_call.1} parent=1 // loop_header
      %s17 = sphi 0, %s21
      %p18 = scmp.ge.s32.totalorder %s17, 4
      %s24 = sphi 0, %s36
      %s25 = sphi 0, %s32
      %s26 = sphi 0, %s24
      %s27 = sphi 0, %s25
      %s28 = sphi 0, %s26
      %s29 = sphi 0, %s27
      %s41 = sphi 0, %s43
      %s44 = sphi 0, %s41
      %s45 = sphi 0, %s44
      %s61 = sphi 0, %s45
      %s69 = sphi 0, %s71
      %s72 = sphi 0, %s69
      %s73 = sphi 0, %s72
      %s89 = sphi 0, %s73
      %s97 = sphi 0, %s99
      %s100 = sphi 0, %s97
      %s101 = sphi 0, %s100
      %s117 = sphi 0, %s101
    $region4: #{tpu_custom_call.1} parent=1 // loop_header_branch
      %20 = sbr.rel (%p18) target = $region8
    $region5: #{tpu_custom_call.1} parent=1 // loop_body
      %s22 = ssub.s32 %s17, 1
      %s23 = ssub.s32 %s17, 2
      %s30 = sadd.s32 1, %s25
      %p31 = scmp.ge.s32.totalorder %s30, 1
      %s32 = scalar_select %p31, 0, %s30
      %s33 = sadd.s32 1, %s24
      %s34 = scalar_select %p31, %s33, %s24
      %p35 = scmp.ge.s32.totalorder %s34, 2
      %s36 = scalar_select %p35, 0, %s34
      %s37 = ssub.s32 %s24, %s36
      %s38 = ssub.s32 %s25, %s32
      %s39 = sor.u32 %s37, %s38
      %p40 = scmp.eq.s32.totalorder %s39, 0
      %s42 = sadd.s32 %s41, 1
      %s43 = scalar_select %p40, %s41, %s42
      %p46 = pneg %p40
      %p47 = scmp.eq.s32.totalorder %s17, 1
      %p48 = por %p46, %p47
      %p49 = scmp.ne.s32.totalorder %s41, %s44
      %p50 = scmp.eq.s32.totalorder %s17, 0
      %p51 = por %p49, %p50
      %p52 = scmp.ne.s32.totalorder %s41, %s44
      %p53 = scmp.eq.s32.totalorder %s22, 1
      %p54 = por %p52, %p53
      %p55 = scmp.ne.s32.totalorder %s44, %s45
      %p56 = scmp.eq.s32.totalorder %s22, 0
      %p57 = por %p55, %p56
      %p58 = scmp.ne.s32.totalorder %s44, %s45
      %p59 = scmp.eq.s32.totalorder %s23, 1
      %p60 = por %p58, %p59
      %p62 = scmp.ne.s32.totalorder %s45, %s61
      %p63 = scmp.eq.s32.totalorder %s23, 0
      %p64 = por %p62, %p63
      %s65 = ssub.s32 %s24, %s36
      %s66 = ssub.s32 %s25, %s32
      %s67 = sor.u32 %s65, %s66
      %p68 = scmp.eq.s32.totalorder %s67, 0
      %s70 = sadd.s32 %s69, 1
      %s71 = scalar_select %p68, %s69, %s70
      %p74 = pneg %p68
      %p75 = scmp.eq.s32.totalorder %s17, 1
      %p76 = por %p74, %p75
      %p77 = scmp.ne.s32.totalorder %s69, %s72
      %p78 = scmp.eq.s32.totalorder %s17, 0
      %p79 = por %p77, %p78
      %p80 = scmp.ne.s32.totalorder %s69, %s72
      %p81 = scmp.eq.s32.totalorder %s22, 1
      %p82 = por %p80, %p81
      %p83 = scmp.ne.s32.totalorder %s72, %s73
      %p84 = scmp.eq.s32.totalorder %s22, 0
      %p85 = por %p83, %p84
      %p86 = scmp.ne.s32.totalorder %s72, %s73
      %p87 = scmp.eq.s32.totalorder %s23, 1
      %p88 = por %p86, %p87
      %p90 = scmp.ne.s32.totalorder %s73, %s89
      %p91 = scmp.eq.s32.totalorder %s23, 0
      %p92 = por %p90, %p91
      %s93 = ssub.s32 %s24, %s36
      %s94 = ssub.s32 %s25, %s32
      %s95 = sor.u32 %s93, %s94
      %p96 = scmp.eq.s32.totalorder %s95, 0
      %s98 = sadd.s32 %s97, 1
      %s99 = scalar_select %p96, %s97, %s98
      %p102 = pneg %p96
      %p103 = scmp.eq.s32.totalorder %s17, 1
      %p104 = por %p102, %p103
      %p105 = scmp.ne.s32.totalorder %s97, %s100
      %p106 = scmp.eq.s32.totalorder %s17, 0
      %p107 = por %p105, %p106
      %p108 = scmp.ne.s32.totalorder %s97, %s100
      %p109 = scmp.eq.s32.totalorder %s22, 1
      %p110 = por %p108, %p109
      %p111 = scmp.ne.s32.totalorder %s100, %s101
      %p112 = scmp.eq.s32.totalorder %s22, 0
      %p113 = por %p111, %p112
      %p114 = scmp.ne.s32.totalorder %s100, %s101
      %p115 = scmp.eq.s32.totalorder %s23, 1
      %p116 = por %p114, %p115
      %p118 = scmp.ne.s32.totalorder %s101, %s117
      %p119 = scmp.eq.s32.totalorder %s23, 0
      %p120 = por %p118, %p119
      %p121 = scmp.le.s32.totalorder 1, %s17
      %p122 = scmp.lt.s32.totalorder %s17, 3
      %p123 = pnand %p121, %p122
      %p124 = pneg %p123
      // Predicated region
      $region9: #{tpu_custom_call.1} parent=5 // pred_check
        _
      $region10: #{tpu_custom_call.1} parent=5 // pred_check_branch
        %126 = sbr.rel (%p123) target = $region12
      $region11: #{tpu_custom_call.1} parent=5 // pred_region
        %s127 = ssub.s32 %s17, 1
      $region12: #{tpu_custom_call.1} parent=5 // pred_fallthru
        _
      %p128 = scmp.lt.s32.totalorder %s17, 2
      // Predicated region
      $region13: #{tpu_custom_call.1} parent=5 // pred_check
        %p129 = pneg %p128
      $region14: #{tpu_custom_call.1} parent=5 // pred_check_branch
        %131 = sbr.rel (%p129) target = $region16
      $region15: #{tpu_custom_call.1} parent=5 // pred_region
        // Predicated region
        $region17: #{tpu_custom_call.1} parent=15 // pred_check
          %p132 = pneg %p51
        $region18: #{tpu_custom_call.1} parent=15 // pred_check_branch
          %134 = sbr.rel (%p132) target = $region20
        $region19: #{tpu_custom_call.1} parent=15 // pred_region
          %s135 = sand.u32 %s41, 1
          %s136 = scalar_lea.sflag [#allocation3], %s135
          %s137 = sand.u32 %s41, 1
          %s138 = smul.addr %s137, 8
          %s139 = scalar_lea.vmem [#allocation2], %s138
          %s140 = smul.u32 2, %s25
          %s142 = ssub.s32 128, 128
          %143 = vsyncadd %s136, %s142
          %s144 = smul.addr %s24, 2
          %s145 = sadd.s32 %s140, %s144
          %s146 = smul.addr %s145, 64
          %s147 = scalar_lea.hbm %s0, %s146
          %s149 = sshll.u32 %s139, 4
          %s150 = int_to_ptr.vmem [resolvable:$true] %s149
          %152 = dma.hbm_to_vmem [thread:$0]  %s147, 128, %s150, %s136
        $region20: #{tpu_custom_call.1} parent=15 // pred_fallthru
          _
        // Predicated region
        $region21: #{tpu_custom_call.1} parent=15 // pred_check
          %p153 = pneg %p79
        $region22: #{tpu_custom_call.1} parent=15 // pred_check_branch
          %155 = sbr.rel (%p153) target = $region24
        $region23: #{tpu_custom_call.1} parent=15 // pred_region
          %s156 = sand.u32 %s69, 1
          %s157 = scalar_lea.sflag [#allocation6], %s156
          %s158 = sand.u32 %s69, 1
          %s159 = smul.addr %s158, 2
          %s160 = scalar_lea.vmem [#allocation5], %s159
          %s161 = smul.u32 2, %s25
          %s163 = ssub.s32 32, 32
          %164 = vsyncadd %s157, %s163
          %s165 = smul.addr %s24, 2
          %s166 = sadd.s32 %s161, %s165
          %s167 = smul.addr %s166, 16
          %s168 = scalar_lea.hbm %s1, %s167
          %s170 = sshll.u32 %s160, 4
          %s171 = int_to_ptr.vmem [resolvable:$true] %s170
          %173 = dma.hbm_to_vmem [thread:$0]  %s168, 32, %s171, %s157
        $region24: #{tpu_custom_call.1} parent=15 // pred_fallthru
          _
      $region16: #{tpu_custom_call.1} parent=5 // pred_fallthru
        _
      %p174 = scmp.le.s32.totalorder 1, %s17
      %p175 = scmp.lt.s32.totalorder %s17, 3
      %p176 = pnand %p174, %p175
      %p177 = pneg %p176
      // Predicated region
      $region25: #{tpu_custom_call.1} parent=5 // pred_check
        _
      $region26: #{tpu_custom_call.1} parent=5 // pred_check_branch
        %179 = sbr.rel (%p176) target = $region28
      $region27: #{tpu_custom_call.1} parent=5 // pred_region
        %s180 = ssub.s32 %s17, 1
        %s181 = sand.u32 %s44, 1
        %s182 = scalar_lea.sflag [#allocation3], %s181
        %s183 = sand.u32 %s44, 1
        %s184 = smul.addr %s183, 8
        %s185 = scalar_lea.vmem [#allocation2], %s184
        // Predicated region
        $region29: #{tpu_custom_call.1} parent=27 // pred_check
          %p186 = pneg %p57
        $region30: #{tpu_custom_call.1} parent=27 // pred_check_branch
          %188 = sbr.rel (%p186) target = $region32
        $region31: #{tpu_custom_call.1} parent=27 // pred_region
          %189 = dma.done %s182, 128
        $region32: #{tpu_custom_call.1} parent=27 // pred_fallthru
          _
        %s190 = sand.u32 %s72, 1
        %s191 = scalar_lea.sflag [#allocation6], %s190
        %s192 = sand.u32 %s72, 1
        %s193 = smul.addr %s192, 2
        %s194 = scalar_lea.vmem [#allocation5], %s193
        // Predicated region
        $region33: #{tpu_custom_call.1} parent=27 // pred_check
          %p195 = pneg %p85
        $region34: #{tpu_custom_call.1} parent=27 // pred_check_branch
          %197 = sbr.rel (%p195) target = $region36
        $region35: #{tpu_custom_call.1} parent=27 // pred_region
          %198 = dma.done %s191, 32
        $region36: #{tpu_custom_call.1} parent=27 // pred_fallthru
          _
        %s199 = sand.u32 %s44, 1
        %s200 = scalar_lea.sflag [#allocation3], %s199
        %s201 = sand.u32 %s44, 1
        %s202 = smul.addr %s201, 8
        %s203 = scalar_lea.vmem [#allocation2], %s202
        %p204 = pneg %p57
        %p205 = pneg %p54
        %s206 = sand.u32 %s72, 1
        %s207 = scalar_lea.sflag [#allocation6], %s206
        %s208 = sand.u32 %s72, 1
        %s209 = smul.addr %s208, 2
        %s210 = scalar_lea.vmem [#allocation5], %s209
        %p211 = pneg %p85
        %p212 = pneg %p82
        %p213 = pneg %p113
        %p214 = pneg %p110
        %s215 = sand.u32 %s100, 1
        %s216 = scalar_lea.sflag [#allocation4], %s215
        %s217 = sand.u32 %s100, 1
        %s218 = smul.addr %s217, 2
        %s219 = scalar_lea.vmem [#allocation7], %s218
        %s220 = smul.u32 2, %s27
        %s221 = smul.u32 2, %s27
        %s222 = smul.u32 2, %s27
        %v223 = vld [vmem:[%s185] sm:$0xff]
        %v224 = vld [vmem:[%s194] sm:$0x3]
        %v226 = vcombine.high %v223, %v223
        %vm228 = vcmask 1043456
        %v229 = vsel %vm228, %v223, -inf
        %v230 = vrot.slane %v229, 4
        %v231 = vmax.f32 %v229, %v230
        %v232 = vrot.slane %v231, 2
        %v233 = vmax.f32 %v231, %v232
        %v234 = vrot.slane %v233, 1
        %v235 = vmax.f32 %v233, %v234
        %v236 = vsel %vm228, %v226, -inf
        %v237 = vrot.slane %v236, 4
        %v238 = vmax.f32 %v236, %v237
        %v239 = vrot.slane %v238, 2
        %v240 = vmax.f32 %v238, %v239
        %v241 = vrot.slane %v240, 1
        %v242 = vmax.f32 %v240, %v241
        %v245 = vcombine.low %v235, %v242
        %v247 = vsub.f32 %v223, %v245
        %v248 = vmul.f32 %v247, 1.442695
        %v249 = vpow.pop %v248
        %v251 = vcombine.high %v249, %v249
        %v253 = vsel %vm228, %v249, 0.0
        %v254 = vrot.slane %v253, 4
        %v255 = vadd.f32 %v253, %v254
        %v256 = vrot.slane %v255, 2
        %v257 = vadd.f32 %v255, %v256
        %v258 = vrot.slane %v257, 1
        %v259 = vadd.f32 %v257, %v258
        %v260 = vsel %vm228, %v251, 0.0
        %v261 = vrot.slane %v260, 4
        %v262 = vadd.f32 %v260, %v261
        %v263 = vrot.slane %v262, 2
        %v264 = vadd.f32 %v262, %v263
        %v265 = vrot.slane %v264, 1
        %v266 = vadd.f32 %v264, %v265
        %v267 = vrcp.pop %v259
        %v268 = vrcp.pop %v266
        %v271 = vcombine.low %v267, %v268
        %v273 = vmul.f32 %v249, %v271
        %v274 = vadd.f32 %v273, 1e-06
        %v275 = vsub.f32 1.0, %v274
        %v276 = vmul.f32 %v275, %v275
        %v277 = vmul.f32 %v276, -0.25
        %v278 = vlog2.pop %v274
        %v279 = vmul.f32 %v278, 0.6931472
        %v280 = vmul.f32 %v277, %v279
        %v281 = vlaneseq
        %v282 = vshrl.u32 %v281, 7
        %v283 = vlaneseq
        %v284 = vshrl.u32 %v283, 7
        %v285 = vsub.s32 0, %v284
        %v286 = vrot.slane %v224, %v285
        %v287 = vlaneseq
        %v288 = vshrl.u32 %v287, 7
        %v289 = vsub.s32 1, %v288
        %v290 = vrot.slane %v224, %v289
        %vm291 = vcmp.eq.s32.totalorder %v282, %v286
        %vm292 = vcmp.eq.s32.totalorder %v282, %v290
        %v293 = vsel %vm291, 1.0, 0.0
        %v294 = vsel %vm292, 1.0, 0.0
        %v295 = vadd.f32 %v293, 1e-06
        %v296 = vadd.f32 %v294, 1e-06
        %v298 = vcombine.high %v280, %v280
        %v300 = vmul.f32 %v295, %v280
        %v301 = vmul.f32 %v296, %v298
        %v302 = vsel %vm228, %v300, 0.0
        %v303 = vrot.slane %v302, 4
        %v304 = vadd.f32 %v302, %v303
        %v305 = vrot.slane %v304, 2
        %v306 = vadd.f32 %v304, %v305
        %v307 = vrot.slane %v306, 1
        %v308 = vadd.f32 %v306, %v307
        %v309 = vsel %vm228, %v301, 0.0
        %v310 = vrot.slane %v309, 4
        %v311 = vadd.f32 %v309, %v310
        %v312 = vrot.slane %v311, 2
        %v313 = vadd.f32 %v311, %v312
        %v314 = vrot.slane %v313, 1
        %v315 = vadd.f32 %v313, %v314
        %v318 = vcombine.low %v308, %v315
        %v320 = vunpack.c.l.s4 1966171168
        %v321 = vunpack.c.0.s8 %v320
        %v322 = vlaneseq
        %v323 = vshrl.u32 %v322, 7
        %v324 = vsub.s32 %v321, %v323
        %v325 = vrot.slane %v318, %v324
        %v327 = vunpack.c.l.s4 1966171168
        %v328 = vunpack.c.0.s8 %v327
        %v329 = vlaneseq
        %v330 = vshrl.u32 %v329, 7
        %v331 = vsub.s32 %v328, %v330
        %v332 = vrot.slane %v325, %v331
        %v334 = vlaneseq
        %vm335 = vcmp.ge.s32.totalorder %v334, 0
        %vm336 = vcmp.lt.s32.totalorder %v334, 256
        %vm337 = vmand %vm335, %vm336
        %338 = vst.msk [vmem:[%s219] sm:$0x3] %vm337, %v332
        %s339 = sand.u32 %s100, 1
        %s340 = scalar_lea.sflag [#allocation4], %s339
        %s341 = sand.u32 %s100, 1
        %s342 = smul.addr %s341, 2
        %s343 = scalar_lea.vmem [#allocation7], %s342
        // Predicated region
        $region37: #{tpu_custom_call.1} parent=27 // pred_check
          %p344 = pneg %p110
        $region38: #{tpu_custom_call.1} parent=27 // pred_check_branch
          %346 = sbr.rel (%p344) target = $region40
        $region39: #{tpu_custom_call.1} parent=27 // pred_region
          %s347 = smul.u32 2, %s27
          %s349 = ssub.s32 32, 32
          %350 = vsyncadd %s340, %s349
          %s351 = smul.addr %s26, 2
          %s352 = sadd.s32 %s347, %s351
          %s353 = smul.addr %s352, 16
          %s354 = scalar_lea.hbm %s2, %s353
          %s356 = sshll.u32 %s343, 4
          %s357 = int_to_ptr.vmem [resolvable:$true] %s356
          %359 = dma.vmem_to_hbm [thread:$0]  %s357, 32, %s354, %s340
        $region40: #{tpu_custom_call.1} parent=27 // pred_fallthru
          _
      $region28: #{tpu_custom_call.1} parent=5 // pred_fallthru
        _
      %p360 = scmp.le.s32.totalorder 2, %s17
      // Predicated region
      $region41: #{tpu_custom_call.1} parent=5 // pred_check
        %p361 = pneg %p360
      $region42: #{tpu_custom_call.1} parent=5 // pred_check_branch
        %363 = sbr.rel (%p361) target = $region44
      $region43: #{tpu_custom_call.1} parent=5 // pred_region
        %s364 = ssub.s32 %s17, 2
        // Predicated region
        $region45: #{tpu_custom_call.1} parent=43 // pred_check
          %p365 = pneg %p116
        $region46: #{tpu_custom_call.1} parent=43 // pred_check_branch
          %367 = sbr.rel (%p365) target = $region48
        $region47: #{tpu_custom_call.1} parent=43 // pred_region
          %s368 = sand.u32 %s101, 1
          %s369 = scalar_lea.sflag [#allocation4], %s368
          %s370 = sand.u32 %s101, 1
          %s371 = smul.addr %s370, 2
          %s372 = scalar_lea.vmem [#allocation7], %s371
          %373 = dma.done %s369, 32
        $region48: #{tpu_custom_call.1} parent=43 // pred_fallthru
          _
      $region44: #{tpu_custom_call.1} parent=5 // pred_fallthru
        _
    $region6: #{tpu_custom_call.1} parent=1 // loop_footer
      %s21 = sadd.s32 1, %s17
    $region7: #{tpu_custom_call.1} parent=1 // loop_footer_branch
      %16 = sbr.rel target = $region3
    $region8: #{tpu_custom_call.1} parent=1 // loop_exit
      _
    %374 = vsyncpa [#allocation3], 1
    %s375 = scalar_lea.sflag [#allocation3], 1
    %376 = vsyncpa %s375, 1
    %377 = vsyncpa [#allocation6], 1
    %s378 = scalar_lea.sflag [#allocation6], 1
    %379 = vsyncpa %s378, 1
    %380 = vsyncpa [#allocation4], 1
    %s381 = scalar_lea.sflag [#allocation4], 1
    %382 = vsyncpa %s381, 1

</llo_original>
